<compile_context>
chip_gen: v7x
topology: tpu7x:2x2x1
jax: 0.10.0
libtpu: 0.0.40
codegen_flags: <defaults>
</compile_context>

<pallas_src>
import math

import jax
import jax.numpy as jnp
from jax.experimental import pallas as pl
from jax.experimental.pallas import tpu as pltpu


# ------------------------------ kernel factory --------------------------------
def _make_ffn_kernel(compute_dtype, accumulate_in_output: bool):
    """Build the SwiGLU FFN kernel for grid (token tile m, intermediate tile j)."""

    def _step(x_ref, wgu_ref, wd_ref, acc_ref):
        # x_ref: (tm, dim)   wgu_ref: (2, dim, ti)   wd_ref: (ti, dim)
        x = x_ref[...].astype(compute_dtype)
        g = jnp.dot(x, wgu_ref[0], preferred_element_type=jnp.float32)   # (tm, ti)
        u = jnp.dot(x, wgu_ref[1], preferred_element_type=jnp.float32)   # (tm, ti)
        # silu(g) = g * sigmoid(g); exp/logistic routes to the EUP slot.
        h = (g * jax.nn.sigmoid(g)) * u                                   # (tm, ti) f32
        acc_ref[...] += jnp.dot(h.astype(compute_dtype), wd_ref[...],
                                preferred_element_type=jnp.float32)       # (tm, dim)

    if accumulate_in_output:
        # float32 output: accumulate directly into the VMEM-resident output block,
        # no separate scratch (saves tm*dim*4 B of VMEM -> headroom on v7x).
        def kernel(x_ref, wgu_ref, wd_ref, o_ref):
            @pl.when(pl.program_id(1) == 0)
            def _init():
                o_ref[...] = jnp.zeros_like(o_ref)

            _step(x_ref, wgu_ref, wd_ref, o_ref)
    else:
        def kernel(x_ref, wgu_ref, wd_ref, o_ref, acc_ref):
            @pl.when(pl.program_id(1) == 0)
            def _init():
                acc_ref[...] = jnp.zeros_like(acc_ref)

            _step(x_ref, wgu_ref, wd_ref, acc_ref)

            @pl.when(pl.program_id(1) == pl.num_programs(1) - 1)
            def _store():
                o_ref[...] = acc_ref[...].astype(o_ref.dtype)

    return kernel


# ----------------------------- one-time weight prep ----------------------------
def prepare_ffn_weights(gate_w, up_w, down_w, compute_dtype=None):
    """One-time layout / dtype preparation. Call at model init, NOT per forward.

    Inputs use the PyTorch nn.Linear layout:
      gate_w, up_w: (inter, dim),  down_w: (dim, inter).
    Returns:
      w_gu: (2, dim, inter)  -- fused gate(0)/up(1) slab, contraction dim first.
      w_d : (inter, dim)     -- down projection, contraction dim first.
    """
    dt = jnp.dtype(compute_dtype) if compute_dtype is not None else gate_w.dtype
    w_gu = jnp.stack([gate_w.T, up_w.T], axis=0).astype(dt)
    w_d = down_w.T.astype(dt)
    return w_gu, w_d


# --------------------------------- tiling helpers ------------------------------
def _round_up(x: int, m: int) -> int:
    return ((x + m - 1) // m) * m


def _pick_inter_tile(inter: int, pref: int) -> int:
    """Largest multiple of 128 <= pref that evenly divides inter (else full inter)."""
    if inter % 128 != 0:
        return inter                       # full extent is exempt from the 128 rule
    t = min(pref, inter)
    t -= t % 128
    while t >= 128:
        if inter % t == 0:
            return t
        t -= 128
    return inter


def _vmem_budget_bytes() -> int:
    """~70% of detected VMEM; conservative 64 MiB fallback (v7x-safe everywhere)."""
    try:
        cap = pltpu.get_tpu_info().vmem_capacity_bytes
    except Exception:
        cap = 64 << 20
    return int(cap * 0.7)


# ----------------------------------- wrapper -----------------------------------
def feed_forward(x: jnp.ndarray,
                 w_gu: jnp.ndarray,   # (2, dim, inter) from prepare_ffn_weights
                 w_d: jnp.ndarray,    # (inter, dim)    from prepare_ffn_weights
                 *, tm_pref: int = 512, ti_pref: int = 256) -> jnp.ndarray:
    """out = down(silu(gate(x)) * up(x)); x: (..., dim) -> (..., dim)."""
    *lead, dim = x.shape
    assert w_gu.ndim == 3 and w_gu.shape[0] == 2 and w_gu.shape[1] == dim, w_gu.shape
    inter = w_gu.shape[2]
    assert w_d.shape == (inter, dim), w_d.shape

    compute_dtype = w_gu.dtype
    out_dtype = x.dtype
    M = math.prod(lead)
    x2d = x.reshape(M, dim)

    xb = jnp.dtype(x.dtype).itemsize
    wb = jnp.dtype(compute_dtype).itemsize
    ob = jnp.dtype(out_dtype).itemsize

    # Token-tile alignment: 16 covers bf16 packing, 8 suffices for f32.
    align = 16 if min(xb, wb, ob) == 2 else 8
    tm = _round_up(min(tm_pref, _round_up(M, align)), align)
    ti = _pick_inter_tile(inter, ti_pref)

    accumulate_in_output = (out_dtype == jnp.float32)
    budget = _vmem_budget_bytes()

    def vmem_need(tm_, ti_):
        n = 2 * tm_ * dim * xb            # x tile (double-buffered)
        n += 2 * 2 * dim * ti_ * wb       # fused gate/up slab
        n += 2 * ti_ * dim * wb           # down-proj slab
        n += 2 * tm_ * dim * ob           # output tile
        if not accumulate_in_output:
            n += tm_ * dim * 4            # f32 accumulator scratch
        return n

    # Shrink tiles until the estimate fits the generation's VMEM budget.
    while vmem_need(tm, ti) > budget and tm > align:
        tm = max(align, _round_up(tm // 2, align))
    while vmem_need(tm, ti) > budget and inter % 128 == 0 and ti > 128:
        new_ti = _pick_inter_tile(inter, ti // 2)
        if new_ti == ti:
            break
        ti = new_ti

    M_pad = _round_up(M, tm)
    if M_pad != M:
        x2d = jnp.pad(x2d, ((0, M_pad - M), (0, 0)))
    grid = (M_pad // tm, inter // ti)

    kernel = _make_ffn_kernel(compute_dtype, accumulate_in_output)
    scratch = [] if accumulate_in_output else [pltpu.VMEM((tm, dim), jnp.float32)]

    cost = pl.CostEstimate(
        flops=6 * M * dim * inter,
        transcendentals=M * inter,
        bytes_accessed=M * dim * (xb + ob) + 3 * dim * inter * wb,
    )

    out2d = pl.pallas_call(
        kernel,
        out_shape=jax.ShapeDtypeStruct((M_pad, dim), out_dtype),
        grid_spec=pltpu.PrefetchScalarGridSpec(
            num_scalar_prefetch=0,
            grid=grid,
            in_specs=[
                pl.BlockSpec((tm, dim), lambda m, j: (m, 0)),      # x tile (reused over j)
                pl.BlockSpec((2, dim, ti), lambda m, j: (0, 0, j)),  # fused gate/up slab
                pl.BlockSpec((ti, dim), lambda m, j: (j, 0)),      # down-proj slab
            ],
            out_specs=pl.BlockSpec((tm, dim), lambda m, j: (m, 0)),  # accumulator-resident
            scratch_shapes=scratch,
        ),
        compiler_params=pltpu.CompilerParams(
            dimension_semantics=("parallel", "arbitrary"),
            vmem_limit_bytes=budget,
        ),
        cost_estimate=cost,
    )(x2d, w_gu, w_d)

    if M_pad != M:
        out2d = out2d[:M]
    return out2d.reshape(*lead, dim)


# ---------------------------------- reference ----------------------------------
def feed_forward_ref(x, gate_w, up_w, down_w):
    g = jnp.einsum("...d,id->...i", x, gate_w)
    u = jnp.einsum("...d,id->...i", x, up_w)
    h = (g * jax.nn.sigmoid(g)) * u
    return jnp.einsum("...i,di->...d", h, down_w)


# ------------------------------------- main -------------------------------------
if __name__ == "__main__":
    key = jax.random.PRNGKey(0)
    k_x, k_g, k_u, k_d = jax.random.split(key, 4)

    B, S = 2, 8
    DIM, INTER = 128, 512       # small but lane-aligned shapes

    x = jax.random.normal(k_x, (B, S, DIM), dtype=jnp.float32)
    # PyTorch nn.Linear weight layout: (out_features, in_features)
    gate_w = jax.random.normal(k_g, (INTER, DIM), dtype=jnp.float32) * (DIM ** -0.5)
    up_w = jax.random.normal(k_u, (INTER, DIM), dtype=jnp.float32) * (DIM ** -0.5)
    down_w = jax.random.normal(k_d, (DIM, INTER), dtype=jnp.float32) * (INTER ** -0.5)

    # ---- float32 path (compute dtype == input dtype) ----
    w_gu, w_d = prepare_ffn_weights(gate_w, up_w, down_w)     # one-time, at "init"
    out = feed_forward(x, w_gu, w_d)
    jax.block_until_ready(out)

    ref = feed_forward_ref(x, gate_w, up_w, down_w)
    assert out.shape == (B, S, DIM) and out.dtype == x.dtype
    assert jnp.allclose(out, ref, atol=2e-2, rtol=2e-2), (
        float(jnp.max(jnp.abs(out - ref))))

    # ---- bfloat16 MXU path (production-recommended: bf16 operands, f32 accum) ----
    x_bf = x.astype(jnp.bfloat16)
    w_gu_bf, w_d_bf = prepare_ffn_weights(gate_w, up_w, down_w,
                                          compute_dtype=jnp.bfloat16)
    out_bf = feed_forward(x_bf, w_gu_bf, w_d_bf)
    jax.block_until_ready(out_bf)

    ref_bf = feed_forward_ref(
        x_bf.astype(jnp.float32),
        jnp.transpose(w_gu_bf[0]).astype(jnp.float32),
        jnp.transpose(w_gu_bf[1]).astype(jnp.float32),
        jnp.transpose(w_d_bf).astype(jnp.float32))
    assert out_bf.shape == (B, S, DIM) and out_bf.dtype == jnp.bfloat16
    assert jnp.allclose(out_bf.astype(jnp.float32), ref_bf, atol=3e-2, rtol=3e-2), (
        float(jnp.max(jnp.abs(out_bf.astype(jnp.float32) - ref_bf))))

    print("KERNEL_OK")
</pallas_src>

<mosaic_0001>
module attributes {stable_mosaic.version = 11 : i64} {
  func.func @kernel(%arg0: i32, %arg1: i32, %arg2: memref<16x128xf32, #tpu.memory_space<vmem>>, %arg3: memref<2x128x256xf32, #tpu.memory_space<vmem>>, %arg4: memref<256x128xf32, #tpu.memory_space<vmem>>, %arg5: memref<16x128xf32, #tpu.memory_space<vmem>>) attributes {dimension_semantics = [#tpu.dimension_semantics<parallel>, #tpu.dimension_semantics<arbitrary>], iteration_bounds = array<i64: 1, 2>, scalar_prefetch = 0 : i64, scratch_operands = 0 : i64, tpu.core_type = #tpu.core_type<tc>, window_params = [{transform_indices = @transform_0, window_bounds = array<i64: 16, 128>}, {transform_indices = @transform_1, window_bounds = array<i64: 2, 128, 256>}, {transform_indices = @transform_2, window_bounds = array<i64: 256, 128>}, {transform_indices = @transform_3, window_bounds = array<i64: 16, 128>}]} {
    %c0_i32 = arith.constant 0 : i32
    %0 = arith.cmpi eq, %arg1, %c0_i32 : i32
    %1 = arith.extui %0 : i1 to i32
    %c0_i32_0 = arith.constant 0 : i32
    %2 = arith.cmpi ne, %1, %c0_i32_0 : i32
    scf.if %2 {
      %cst_16 = arith.constant 0.000000e+00 : f32
      %22 = vector.broadcast %cst_16 : f32 to vector<16x128xf32>
      %c0_17 = arith.constant 0 : index
      %c0_18 = arith.constant 0 : index
      %23 = vector.load %arg5[%c0_17, %c0_18] : memref<16x128xf32, #tpu.memory_space<vmem>>, vector<16x128xf32>
      tpu.vector_store %arg5[%c0_17, %c0_18], %22 {strides = array<i32>} : memref<16x128xf32, #tpu.memory_space<vmem>>, vector<16x128xf32>,
    } else {
    }
    %c0 = arith.constant 0 : index
    %c0_1 = arith.constant 0 : index
    %3 = vector.load %arg2[%c0, %c0_1] : memref<16x128xf32, #tpu.memory_space<vmem>>, vector<16x128xf32>
    %c0_2 = arith.constant 0 : index
    %c0_3 = arith.constant 0 : index
    %c0_4 = arith.constant 0 : index
    %4 = vector.load %arg3[%c0_2, %c0_3, %c0_4] : memref<2x128x256xf32, #tpu.memory_space<vmem>>, vector<1x128x256xf32>
    %5 = vector.shape_cast %4 : vector<1x128x256xf32> to vector<128x256xf32>
    %cst = arith.constant dense<0.000000e+00> : vector<16x256xf32>
    %6 = tpu.matmul %3, %5, %cst {dimension_numbers = #tpu.dot_dimension_numbers<[1], [0], [0], [1], [0, 0, 1, 1], [], []>} : vector<16x128xf32>, vector<128x256xf32>, vector<16x256xf32> -> vector<16x256xf32>
    %c1 = arith.constant 1 : index
    %c0_5 = arith.constant 0 : index
    %c0_6 = arith.constant 0 : index
    %7 = vector.load %arg3[%c1, %c0_5, %c0_6] : memref<2x128x256xf32, #tpu.memory_space<vmem>>, vector<1x128x256xf32>
    %8 = vector.shape_cast %7 : vector<1x128x256xf32> to vector<128x256xf32>
    %cst_7 = arith.constant dense<0.000000e+00> : vector<16x256xf32>
    %9 = tpu.matmul %3, %8, %cst_7 {dimension_numbers = #tpu.dot_dimension_numbers<[1], [0], [0], [1], [0, 0, 1, 1], [], []>} : vector<16x128xf32>, vector<128x256xf32>, vector<16x256xf32> -> vector<16x256xf32>
    %10 = arith.negf %6 : vector<16x256xf32>
    %11 = math.exp %10 : vector<16x256xf32>
    %cst_8 = arith.constant 1.000000e+00 : f32
    %12 = vector.broadcast %cst_8 : f32 to vector<16x256xf32>
    %13 = arith.addf %12, %11 : vector<16x256xf32>
    %14 = arith.divf %12, %13 : vector<16x256xf32>
    %15 = arith.mulf %6, %14 : vector<16x256xf32>
    %16 = arith.mulf %15, %9 : vector<16x256xf32>
    %c0_9 = arith.constant 0 : index
    %c0_10 = arith.constant 0 : index
    %17 = vector.load %arg5[%c0_9, %c0_10] : memref<16x128xf32, #tpu.memory_space<vmem>>, vector<16x128xf32>
    %c0_11 = arith.constant 0 : index
    %c0_12 = arith.constant 0 : index
    %18 = vector.load %arg4[%c0_11, %c0_12] : memref<256x128xf32, #tpu.memory_space<vmem>>, vector<256x128xf32>
    %cst_13 = arith.constant dense<0.000000e+00> : vector<16x128xf32>
    %19 = tpu.matmul %16, %18, %cst_13 {dimension_numbers = #tpu.dot_dimension_numbers<[1], [0], [0], [1], [0, 0, 1, 1], [], []>} : vector<16x256xf32>, vector<256x128xf32>, vector<16x128xf32> -> vector<16x128xf32>
    %20 = arith.addf %17, %19 : vector<16x128xf32>
    %c0_14 = arith.constant 0 : index
    %c0_15 = arith.constant 0 : index
    %21 = vector.load %arg5[%c0_14, %c0_15] : memref<16x128xf32, #tpu.memory_space<vmem>>, vector<16x128xf32>
    tpu.vector_store %arg5[%c0_14, %c0_15], %20 {strides = array<i32>} : memref<16x128xf32, #tpu.memory_space<vmem>>, vector<16x128xf32>,
    return
  }
  func.func @transform_0(%arg0: i32, %arg1: i32) -> (i32, i32) {
    %c0_i32 = arith.constant 0 : i32
    %c0_i32_0 = arith.constant 0 : i32
    return %arg0, %c0_i32 : i32, i32
  }
  func.func @transform_1(%arg0: i32, %arg1: i32) -> (i32, i32, i32) {
    %c0_i32 = arith.constant 0 : i32
    %c0_i32_0 = arith.constant 0 : i32
    %c0_i32_1 = arith.constant 0 : i32
    return %c0_i32, %c0_i32_0, %arg1 : i32, i32, i32
  }
  func.func @transform_2(%arg0: i32, %arg1: i32) -> (i32, i32) {
    %c0_i32 = arith.constant 0 : i32
    %c0_i32_0 = arith.constant 0 : i32
    return %arg1, %c0_i32 : i32, i32
  }
  func.func @transform_3(%arg0: i32, %arg1: i32) -> (i32, i32) {
    %c0_i32 = arith.constant 0 : i32
    %c0_i32_0 = arith.constant 0 : i32
    return %arg0, %c0_i32 : i32, i32
  }
}

</mosaic_0001>

<llo_original>
// kernel: tpu_custom_call.1
$region0: #{tpu_custom_call.1}
  #allocation0 [shape = 'u32[]', space=smem, size = 0x4, offset = 0x4, fixed_abs, tag = 'smem constant byte address 0x4 - core index']
  #allocation1 [shape = 'u32[144,128]{1,0:T(1,128)}', space=vmem, size = 0x12000, scoped, tag = 'internal scratch']
  %s0 = inlined_call_operand.hbm [shape: f32[16,128], index: 0, kind: input, shape index: {}]
  %s1 = inlined_call_operand.hbm [shape: f32[2,128,512], index: 1, kind: input, shape index: {}]
  %s2 = inlined_call_operand.hbm [shape: f32[512,128], index: 2, kind: input, shape index: {}]
  %s3 = inlined_call_operand.hbm [shape: f32[16,128], index: 3, kind: output, shape index: {}]
  %s4 = sld [smem:[#allocation0]]
  $region61: #{tpu_custom_call.1} parent=0
    _
  %s6 = ssub.s32 1, %s4
  %s7 = scalar_select 0, %s6, %s4
  $region1: #{tpu_custom_call.1} parent=0
    #allocation2 [shape = 'u8[8192]{0}', space=vmem, size = 0x2000, scoped, tag = 'input window, operand 0, single buffered']
    #allocation3 [shape = 's32[2]{0}', space=sflag, size = 0x8, scoped, tag = 'scoped memory for tpu_custom_call.1']
    #allocation4 [shape = 's32[2]{0}', space=sflag, size = 0x8, scoped, tag = 'scoped memory for tpu_custom_call.1']
    #allocation5 [shape = 'u8[524288]{0}', space=vmem, size = 0x80000, scoped, tag = 'input window, operand 1']
    #allocation6 [shape = 's32[2]{0}', space=sflag, size = 0x8, scoped, tag = 'scoped memory for tpu_custom_call.1']
    #allocation7 [shape = 'u8[262144]{0}', space=vmem, size = 0x40000, scoped, tag = 'input window, operand 2']
    #allocation8 [shape = 'u8[8192]{0}', space=vmem, size = 0x2000, scoped, tag = 'output window, operand 0, single buffered']
    %8 = vsyncpa [#allocation3], 0
    %9 = vsyncpa [#allocation6], 0
    %s10 = scalar_lea.sflag [#allocation6], 1
    %11 = vsyncpa %s10, 0
    %12 = vsyncpa [#allocation4], 0
    loop: start=0, step=1, limit=4
    $region2: #{tpu_custom_call.1} parent=1 // loop_pre_header
      _
    $region3: #{tpu_custom_call.1} parent=1 // loop_header
      %s14 = sphi 0, %s18
      %p15 = scmp.ge.s32.totalorder %s14, 4
      %s21 = sphi 0, %s33
      %s22 = sphi 0, %s29
      %s23 = sphi 0, %s21
      %s24 = sphi 0, %s22
      %s25 = sphi 0, %s23
      %s26 = sphi 0, %s24
      %s36 = sphi 0, %s38
      %s39 = sphi 0, %s36
      %s40 = sphi 0, %s39
      %s56 = sphi 0, %s40
      %s62 = sphi 0, %s64
      %s65 = sphi 0, %s62
      %s66 = sphi 0, %s65
      %s82 = sphi 0, %s66
      %s88 = sphi 0, %s90
      %s91 = sphi 0, %s88
      %s92 = sphi 0, %s91
      %s108 = sphi 0, %s92
      %s114 = sphi 0, %s116
      %s117 = sphi 0, %s114
      %s118 = sphi 0, %s117
      %s134 = sphi 0, %s118
    $region4: #{tpu_custom_call.1} parent=1 // loop_header_branch
      %17 = sbr.rel (%p15) target = $region8
    $region5: #{tpu_custom_call.1} parent=1 // loop_body
      %s19 = ssub.s32 %s14, 1
      %s20 = ssub.s32 %s14, 2
      %s27 = sadd.s32 1, %s22
      %p28 = scmp.ge.s32.totalorder %s27, 2
      %s29 = scalar_select %p28, 0, %s27
      %s30 = sadd.s32 1, %s21
      %s31 = scalar_select %p28, %s30, %s21
      %p32 = scmp.ge.s32.totalorder %s31, 1
      %s33 = scalar_select %p32, 0, %s31
      %s34 = ssub.s32 %s21, %s33
      %p35 = scmp.eq.s32.totalorder %s34, 0
      %s37 = sadd.s32 %s36, 1
      %s38 = scalar_select %p35, %s36, %s37
      %p41 = pneg %p35
      %p42 = scmp.eq.s32.totalorder %s14, 1
      %p43 = por %p41, %p42
      %p44 = scmp.ne.s32.totalorder %s36, %s39
      %p45 = scmp.eq.s32.totalorder %s14, 0
      %p46 = por %p44, %p45
      %p47 = scmp.ne.s32.totalorder %s36, %s39
      %p48 = scmp.eq.s32.totalorder %s19, 1
      %p49 = por %p47, %p48
      %p50 = scmp.ne.s32.totalorder %s39, %s40
      %p51 = scmp.eq.s32.totalorder %s19, 0
      %p52 = por %p50, %p51
      %p53 = scmp.ne.s32.totalorder %s39, %s40
      %p54 = scmp.eq.s32.totalorder %s20, 1
      %p55 = por %p53, %p54
      %p57 = scmp.ne.s32.totalorder %s40, %s56
      %p58 = scmp.eq.s32.totalorder %s20, 0
      %p59 = por %p57, %p58
      %s60 = ssub.s32 %s22, %s29
      %p61 = scmp.eq.s32.totalorder %s60, 0
      %s63 = sadd.s32 %s62, 1
      %s64 = scalar_select %p61, %s62, %s63
      %p67 = pneg %p61
      %p68 = scmp.eq.s32.totalorder %s14, 1
      %p69 = por %p67, %p68
      %p70 = scmp.ne.s32.totalorder %s62, %s65
      %p71 = scmp.eq.s32.totalorder %s14, 0
      %p72 = por %p70, %p71
      %p73 = scmp.ne.s32.totalorder %s62, %s65
      %p74 = scmp.eq.s32.totalorder %s19, 1
      %p75 = por %p73, %p74
      %p76 = scmp.ne.s32.totalorder %s65, %s66
      %p77 = scmp.eq.s32.totalorder %s19, 0
      %p78 = por %p76, %p77
      %p79 = scmp.ne.s32.totalorder %s65, %s66
      %p80 = scmp.eq.s32.totalorder %s20, 1
      %p81 = por %p79, %p80
      %p83 = scmp.ne.s32.totalorder %s66, %s82
      %p84 = scmp.eq.s32.totalorder %s20, 0
      %p85 = por %p83, %p84
      %s86 = ssub.s32 %s22, %s29
      %p87 = scmp.eq.s32.totalorder %s86, 0
      %s89 = sadd.s32 %s88, 1
      %s90 = scalar_select %p87, %s88, %s89
      %p93 = pneg %p87
      %p94 = scmp.eq.s32.totalorder %s14, 1
      %p95 = por %p93, %p94
      %p96 = scmp.ne.s32.totalorder %s88, %s91
      %p97 = scmp.eq.s32.totalorder %s14, 0
      %p98 = por %p96, %p97
      %p99 = scmp.ne.s32.totalorder %s88, %s91
      %p100 = scmp.eq.s32.totalorder %s19, 1
      %p101 = por %p99, %p100
      %p102 = scmp.ne.s32.totalorder %s91, %s92
      %p103 = scmp.eq.s32.totalorder %s19, 0
      %p104 = por %p102, %p103
      %p105 = scmp.ne.s32.totalorder %s91, %s92
      %p106 = scmp.eq.s32.totalorder %s20, 1
      %p107 = por %p105, %p106
      %p109 = scmp.ne.s32.totalorder %s92, %s108
      %p110 = scmp.eq.s32.totalorder %s20, 0
      %p111 = por %p109, %p110
      %s112 = ssub.s32 %s21, %s33
      %p113 = scmp.eq.s32.totalorder %s112, 0
      %s115 = sadd.s32 %s114, 1
      %s116 = scalar_select %p113, %s114, %s115
      %p119 = pneg %p113
      %p120 = scmp.eq.s32.totalorder %s14, 1
      %p121 = por %p119, %p120
      %p122 = scmp.ne.s32.totalorder %s114, %s117
      %p123 = scmp.eq.s32.totalorder %s14, 0
      %p124 = por %p122, %p123
      %p125 = scmp.ne.s32.totalorder %s114, %s117
      %p126 = scmp.eq.s32.totalorder %s19, 1
      %p127 = por %p125, %p126
      %p128 = scmp.ne.s32.totalorder %s117, %s118
      %p129 = scmp.eq.s32.totalorder %s19, 0
      %p130 = por %p128, %p129
      %p131 = scmp.ne.s32.totalorder %s117, %s118
      %p132 = scmp.eq.s32.totalorder %s20, 1
      %p133 = por %p131, %p132
      %p135 = scmp.ne.s32.totalorder %s118, %s134
      %p136 = scmp.eq.s32.totalorder %s20, 0
      %p137 = por %p135, %p136
      %p138 = scmp.le.s32.totalorder 1, %s14
      %p139 = scmp.lt.s32.totalorder %s14, 3
      %p140 = pnand %p138, %p139
      %p141 = pneg %p140
      // Predicated region
      $region9: #{tpu_custom_call.1} parent=5 // pred_check
        _
      $region10: #{tpu_custom_call.1} parent=5 // pred_check_branch
        %143 = sbr.rel (%p140) target = $region12
      $region11: #{tpu_custom_call.1} parent=5 // pred_region
        %s144 = ssub.s32 %s14, 1
        // Predicated region
        $region13: #{tpu_custom_call.1} parent=11 // pred_check
          %p145 = pneg %p52
        $region14: #{tpu_custom_call.1} parent=11 // pred_check_branch
          %147 = sbr.rel (%p145) target = $region16
        $region15: #{tpu_custom_call.1} parent=11 // pred_region
          %s148 = smul.u32 2, %s23
          %s150 = ssub.s32 256, 256
          %151 = vsyncadd [#allocation3], %s150
          %s152 = smul.addr %s148, 128
          %s153 = scalar_lea.hbm %s0, %s152
          %s154 = sshll.u32 [#allocation2], 4
          %s155 = int_to_ptr.vmem [resolvable:$true] %s154
          %160 = dma.hbm_to_vmem [thread:$0]  %s153, 256, %s155, [#allocation3], 128, 128, 8
        $region16: #{tpu_custom_call.1} parent=11 // pred_fallthru
          _
      $region12: #{tpu_custom_call.1} parent=5 // pred_fallthru
        _
      %p161 = scmp.lt.s32.totalorder %s14, 2
      // Predicated region
      $region17: #{tpu_custom_call.1} parent=5 // pred_check
        %p162 = pneg %p161
      $region18: #{tpu_custom_call.1} parent=5 // pred_check_branch
        %164 = sbr.rel (%p162) target = $region20
      $region19: #{tpu_custom_call.1} parent=5 // pred_region
        // Predicated region
        $region21: #{tpu_custom_call.1} parent=19 // pred_check
          %p165 = pneg %p72
        $region22: #{tpu_custom_call.1} parent=19 // pred_check_branch
          %167 = sbr.rel (%p165) target = $region24
        $region23: #{tpu_custom_call.1} parent=19 // pred_region
          %s168 = sand.u32 %s14, 1
          %s169 = scalar_lea.sflag [#allocation6], %s168
          %s170 = sand.u32 %s62, 1
          %s171 = smul.addr %s170, 512
          %s172 = scalar_lea.vmem [#allocation5], %s171
          %s173 = smul.u32 2, %s22
          %s175 = ssub.s32 8192, 8192
          %176 = vsyncadd %s169, %s175
          %s177 = smul.addr %s173, 128
          %s178 = scalar_lea.hbm %s1, %s177
          %s179 = sshll.u32 %s172, 4
          %s180 = int_to_ptr.vmem [resolvable:$true] %s179
          %185 = dma.hbm_to_vmem [thread:$0]  %s178, 8192, %s180, %s169, 512, 256, 16
        $region24: #{tpu_custom_call.1} parent=19 // pred_fallthru
          _
        // Predicated region
        $region25: #{tpu_custom_call.1} parent=19 // pred_check
          %p186 = pneg %p98
        $region26: #{tpu_custom_call.1} parent=19 // pred_check_branch
          %188 = sbr.rel (%p186) target = $region28
        $region27: #{tpu_custom_call.1} parent=19 // pred_region
          %s189 = sand.u32 %s14, 1
          %s190 = scalar_lea.sflag [#allocation6], %s189
          %s191 = sand.u32 %s88, 1
          %s192 = smul.addr %s191, 256
          %s193 = scalar_lea.vmem [#allocation7], %s192
          %s194 = smul.u32 32, %s22
          %s196 = ssub.s32 4096, 4096
          %197 = vsyncadd %s190, %s196
          %s198 = smul.addr %s194, 128
          %s199 = scalar_lea.hbm %s2, %s198
          %s200 = sshll.u32 %s193, 4
          %s201 = int_to_ptr.vmem [resolvable:$true] %s200
          %206 = dma.hbm_to_vmem [thread:$0]  %s199, 4096, %s201, %s190, 128, 128, 8
        $region28: #{tpu_custom_call.1} parent=19 // pred_fallthru
          _
      $region20: #{tpu_custom_call.1} parent=5 // pred_fallthru
        _
      %p207 = scmp.le.s32.totalorder 1, %s14
      %p208 = scmp.lt.s32.totalorder %s14, 3
      %p209 = pnand %p207, %p208
      %p210 = pneg %p209
      // Predicated region
      $region29: #{tpu_custom_call.1} parent=5 // pred_check
        _
      $region30: #{tpu_custom_call.1} parent=5 // pred_check_branch
        %212 = sbr.rel (%p209) target = $region32
      $region31: #{tpu_custom_call.1} parent=5 // pred_region
        %s213 = ssub.s32 %s14, 1
        // Predicated region
        $region33: #{tpu_custom_call.1} parent=31 // pred_check
          %p214 = pneg %p52
        $region34: #{tpu_custom_call.1} parent=31 // pred_check_branch
          %216 = sbr.rel (%p214) target = $region36
        $region35: #{tpu_custom_call.1} parent=31 // pred_region
          %217 = dma.done [#allocation3], 256
        $region36: #{tpu_custom_call.1} parent=31 // pred_fallthru
          _
        %s218 = sand.u32 %s19, 1
        %s219 = scalar_lea.sflag [#allocation6], %s218
        %s220 = sand.u32 %s65, 1
        %s221 = smul.addr %s220, 512
        %s222 = scalar_lea.vmem [#allocation5], %s221
        // Predicated region
        $region37: #{tpu_custom_call.1} parent=31 // pred_check
          %p223 = pneg %p78
        $region38: #{tpu_custom_call.1} parent=31 // pred_check_branch
          %225 = sbr.rel (%p223) target = $region40
        $region39: #{tpu_custom_call.1} parent=31 // pred_region
          %226 = dma.done %s219, 8192
        $region40: #{tpu_custom_call.1} parent=31 // pred_fallthru
          _
        %s227 = sand.u32 %s19, 1
        %s228 = scalar_lea.sflag [#allocation6], %s227
        %s229 = sand.u32 %s91, 1
        %s230 = smul.addr %s229, 256
        %s231 = scalar_lea.vmem [#allocation7], %s230
        // Predicated region
        $region41: #{tpu_custom_call.1} parent=31 // pred_check
          %p232 = pneg %p104
        $region42: #{tpu_custom_call.1} parent=31 // pred_check_branch
          %234 = sbr.rel (%p232) target = $region44
        $region43: #{tpu_custom_call.1} parent=31 // pred_region
          %235 = dma.done %s228, 4096
        $region44: #{tpu_custom_call.1} parent=31 // pred_fallthru
          _
        %p236 = pneg %p52
        %p237 = pneg %p49
        %s238 = sand.u32 %s19, 1
        %s239 = scalar_lea.sflag [#allocation6], %s238
        %s240 = sand.u32 %s65, 1
        %s241 = smul.addr %s240, 512
        %s242 = scalar_lea.vmem [#allocation5], %s241
        %p243 = pneg %p78
        %p244 = pneg %p75
        %s245 = sand.u32 %s19, 1
        %s246 = scalar_lea.sflag [#allocation6], %s245
        %s247 = sand.u32 %s91, 1
        %s248 = smul.addr %s247, 256
        %s249 = scalar_lea.vmem [#allocation7], %s248
        %p250 = pneg %p104
        %p251 = pneg %p101
        %p252 = pneg %p130
        %p253 = pneg %p127
        %s254 = smul.u32 2, %s23
        %s255 = smul.u32 2, %s24
        %s256 = smul.u32 32, %s24
        %s257 = smul.u32 2, %s23
        %p258 = scmp.eq.s32.totalorder %s24, 0
        // Predicated region
        $region45: #{tpu_custom_call.1} parent=31 // pred_check
          %p259 = pneg %p258
        $region46: #{tpu_custom_call.1} parent=31 // pred_check_branch
          %261 = sbr.rel (%p259) target = $region48
        $region47: #{tpu_custom_call.1} parent=31 // pred_region
          %262 = vst [vmem:[#allocation8] sm:$0xff] 0.0
          %263 = vst [vmem:[#allocation8 + $0x8] sm:$0xff] 0.0
        $region48: #{tpu_custom_call.1} parent=31 // pred_fallthru
          _
        %v264 = vld [vmem:[#allocation2] sm:$0xff]
        %v265 = vld [vmem:[#allocation2 + $0x8] sm:$0xff]
        %v266 = vld [vmem:[%s222] sm:$0xff]
        %v267 = vld [vmem:[%s222 + $0x8] sm:$0xff]
        %v268 = vld [vmem:[%s222 + $0x10] sm:$0xff]
        %v269 = vld [vmem:[%s222 + $0x18] sm:$0xff]
        %v270 = vld [vmem:[%s222 + $0x20] sm:$0xff]
        %v271 = vld [vmem:[%s222 + $0x28] sm:$0xff]
        %v272 = vld [vmem:[%s222 + $0x30] sm:$0xff]
        %v273 = vld [vmem:[%s222 + $0x38] sm:$0xff]
        %v274 = vld [vmem:[%s222 + $0x40] sm:$0xff]
        %v275 = vld [vmem:[%s222 + $0x48] sm:$0xff]
        %v276 = vld [vmem:[%s222 + $0x50] sm:$0xff]
        %v277 = vld [vmem:[%s222 + $0x58] sm:$0xff]
        %v278 = vld [vmem:[%s222 + $0x60] sm:$0xff]
        %v279 = vld [vmem:[%s222 + $0x68] sm:$0xff]
        %v280 = vld [vmem:[%s222 + $0x70] sm:$0xff]
        %v281 = vld [vmem:[%s222 + $0x78] sm:$0xff]
        %v282 = vld [vmem:[%s222 + $0x80] sm:$0xff]
        %v283 = vld [vmem:[%s222 + $0x88] sm:$0xff]
        %v284 = vld [vmem:[%s222 + $0x90] sm:$0xff]
        %v285 = vld [vmem:[%s222 + $0x98] sm:$0xff]
        %v286 = vld [vmem:[%s222 + $0xa0] sm:$0xff]
        %v287 = vld [vmem:[%s222 + $0xa8] sm:$0xff]
        %v288 = vld [vmem:[%s222 + $0xb0] sm:$0xff]
        %v289 = vld [vmem:[%s222 + $0xb8] sm:$0xff]
        %v290 = vld [vmem:[%s222 + $0xc0] sm:$0xff]
        %v291 = vld [vmem:[%s222 + $0xc8] sm:$0xff]
        %v292 = vld [vmem:[%s222 + $0xd0] sm:$0xff]
        %v293 = vld [vmem:[%s222 + $0xd8] sm:$0xff]
        %v294 = vld [vmem:[%s222 + $0xe0] sm:$0xff]
        %v295 = vld [vmem:[%s222 + $0xe8] sm:$0xff]
        %v296 = vld [vmem:[%s222 + $0xf0] sm:$0xff]
        %v297 = vld [vmem:[%s222 + $0xf8] sm:$0xff]
        %298 = vmatprep.subr.mxu0 %v267
        %299 = vmatpush1.msra.mxu0 %v266
        %300 = vmatprep.subr.mxu0 %v269
        %301 = vmatpush1.msra.mxu0 %v268
        %302 = vmatprep.subr.mxu0 %v271
        %303 = vmatpush1.msra.mxu0 %v270
        %304 = vmatprep.subr.mxu0 %v273
        %305 = vmatpush1.msra.mxu0 %v272
        %306 = vmatprep.subr.mxu0 %v275
        %307 = vmatpush1.msra.mxu0 %v274
        %308 = vmatprep.subr.mxu0 %v277
        %309 = vmatpush1.msra.mxu0 %v276
        %310 = vmatprep.subr.mxu0 %v279
        %311 = vmatpush1.msra.mxu0 %v278
        %312 = vmatprep.subr.mxu0 %v281
        %313 = vmatpush1.msra.mxu0 %v280
        %314 = vmatprep.subr.mxu0 %v283
        %315 = vmatpush1.msra.mxu0 %v282
        %316 = vmatprep.subr.mxu0 %v285
        %317 = vmatpush1.msra.mxu0 %v284
        %318 = vmatprep.subr.mxu0 %v287
        %319 = vmatpush1.msra.mxu0 %v286
        %320 = vmatprep.subr.mxu0 %v289
        %321 = vmatpush1.msra.mxu0 %v288
        %322 = vmatprep.subr.mxu0 %v291
        %323 = vmatpush1.msra.mxu0 %v290
        %324 = vmatprep.subr.mxu0 %v293
        %325 = vmatpush1.msra.mxu0 %v292
        %326 = vmatprep.subr.mxu0 %v295
        %327 = vmatpush1.msra.mxu0 %v294
        %328 = vmatprep.subr.mxu0 %v297
        %329 = vmatpush1.msra.mxu0 %v296
        %330 = vmatprep.subr.mxu0 0.0
        %331 = vmatpush1.msra.mxu0 0.0
        %332 = vmatprep.subr.mxu0 0.0
        %333 = vmatpush1.msra.mxu0 0.0
        %334 = vmatprep.subr.mxu0 0.0
        %335 = vmatpush1.msra.mxu0 0.0
        %336 = vmatprep.subr.mxu0 0.0
        %337 = vmatpush1.msra.mxu0 0.0
        %338 = vmatprep.subr.mxu0 0.0
        %339 = vmatpush1.msra.mxu0 0.0
        %340 = vmatprep.subr.mxu0 0.0
        %341 = vmatpush1.msra.mxu0 0.0
        %342 = vmatprep.subr.mxu0 0.0
        %343 = vmatpush1.msra.mxu0 0.0
        %344 = vmatprep.subr.mxu0 0.0
        %345 = vmatpush1.msra.mxu0 0.0
        %346 = vmatprep.subr.mxu0 0.0
        %347 = vmatpush1.msra.mxu0 0.0
        %348 = vmatprep.subr.mxu0 0.0
        %349 = vmatpush1.msra.mxu0 0.0
        %350 = vmatprep.subr.mxu0 0.0
        %351 = vmatpush1.msra.mxu0 0.0
        %352 = vmatprep.subr.mxu0 0.0
        %353 = vmatpush1.msra.mxu0 0.0
        %354 = vmatprep.subr.mxu0 0.0
        %355 = vmatpush1.msra.mxu0 0.0
        %356 = vmatprep.subr.mxu0 0.0
        %357 = vmatpush1.msra.mxu0 0.0
        %358 = vmatprep.subr.mxu0 0.0
        %359 = vmatpush1.msra.mxu0 0.0
        %360 = vmatprep.subr.mxu0 0.0
        %361 = vmatpush1.msra.mxu0 0.0
        %362 = vmatprep.mubr.f32.mxu0 0.0
        %363 = vmatmul.mubr.f32.gmra.mrb[0].mxu0 %v264
        %v364 = vpop.f32.mrb[0].mxu0
        %v365 = vadd.f32 0.0, %v364
        %v366 = vpop.f32.mrb[0].mxu0
        %v367 = vadd.f32 0.0, %v366
        %368 = vmatprep.mubr.f32.mxu0 0.0
        %369 = vmatmul.mubr.f32.gmra.mrb[0].mxu0 %v265
        %v370 = vpop.f32.mrb[0].mxu0
        %v371 = vadd.f32 0.0, %v370
        %v372 = vpop.f32.mrb[0].mxu0
        %v373 = vadd.f32 0.0, %v372
        %374 = vdwg.mxu0
        %s375 = scalar_lea.vmem %s222, 256 [#allocation5]
        %v376 = vld [vmem:[%s375] sm:$0xff]
        %v377 = vld [vmem:[%s375 + $0x8] sm:$0xff]
        %v378 = vld [vmem:[%s375 + $0x10] sm:$0xff]
        %v379 = vld [vmem:[%s375 + $0x18] sm:$0xff]
        %v380 = vld [vmem:[%s375 + $0x20] sm:$0xff]
        %v381 = vld [vmem:[%s375 + $0x28] sm:$0xff]
        %v382 = vld [vmem:[%s375 + $0x30] sm:$0xff]
        %v383 = vld [vmem:[%s375 + $0x38] sm:$0xff]
        %v384 = vld [vmem:[%s375 + $0x40] sm:$0xff]
        %v385 = vld [vmem:[%s375 + $0x48] sm:$0xff]
        %v386 = vld [vmem:[%s375 + $0x50] sm:$0xff]
        %v387 = vld [vmem:[%s375 + $0x58] sm:$0xff]
        %v388 = vld [vmem:[%s375 + $0x60] sm:$0xff]
        %v389 = vld [vmem:[%s375 + $0x68] sm:$0xff]
        %v390 = vld [vmem:[%s375 + $0x70] sm:$0xff]
        %v391 = vld [vmem:[%s375 + $0x78] sm:$0xff]
        %v392 = vld [vmem:[%s375 + $0x80] sm:$0xff]
        %v393 = vld [vmem:[%s375 + $0x88] sm:$0xff]
        %v394 = vld [vmem:[%s375 + $0x90] sm:$0xff]
        %v395 = vld [vmem:[%s375 + $0x98] sm:$0xff]
        %v396 = vld [vmem:[%s375 + $0xa0] sm:$0xff]
        %v397 = vld [vmem:[%s375 + $0xa8] sm:$0xff]
        %v398 = vld [vmem:[%s375 + $0xb0] sm:$0xff]
        %v399 = vld [vmem:[%s375 + $0xb8] sm:$0xff]
        %v400 = vld [vmem:[%s375 + $0xc0] sm:$0xff]
        %v401 = vld [vmem:[%s375 + $0xc8] sm:$0xff]
        %v402 = vld [vmem:[%s375 + $0xd0] sm:$0xff]
        %v403 = vld [vmem:[%s375 + $0xd8] sm:$0xff]
        %v404 = vld [vmem:[%s375 + $0xe0] sm:$0xff]
        %v405 = vld [vmem:[%s375 + $0xe8] sm:$0xff]
        %v406 = vld [vmem:[%s375 + $0xf0] sm:$0xff]
        %v407 = vld [vmem:[%s375 + $0xf8] sm:$0xff]
        %408 = vmatprep.subr.mxu0 %v377
        %409 = vmatpush1.msra.mxu0 %v376
        %410 = vmatprep.subr.mxu0 %v379
        %411 = vmatpush1.msra.mxu0 %v378
        %412 = vmatprep.subr.mxu0 %v381
        %413 = vmatpush1.msra.mxu0 %v380
        %414 = vmatprep.subr.mxu0 %v383
        %415 = vmatpush1.msra.mxu0 %v382
        %416 = vmatprep.subr.mxu0 %v385
        %417 = vmatpush1.msra.mxu0 %v384
        %418 = vmatprep.subr.mxu0 %v387
        %419 = vmatpush1.msra.mxu0 %v386
        %420 = vmatprep.subr.mxu0 %v389
        %421 = vmatpush1.msra.mxu0 %v388
        %422 = vmatprep.subr.mxu0 %v391
        %423 = vmatpush1.msra.mxu0 %v390
        %424 = vmatprep.subr.mxu0 %v393
        %425 = vmatpush1.msra.mxu0 %v392
        %426 = vmatprep.subr.mxu0 %v395
        %427 = vmatpush1.msra.mxu0 %v394
        %428 = vmatprep.subr.mxu0 %v397
        %429 = vmatpush1.msra.mxu0 %v396
        %430 = vmatprep.subr.mxu0 %v399
        %431 = vmatpush1.msra.mxu0 %v398
        %432 = vmatprep.subr.mxu0 %v401
        %433 = vmatpush1.msra.mxu0 %v400
        %434 = vmatprep.subr.mxu0 %v403
        %435 = vmatpush1.msra.mxu0 %v402
        %436 = vmatprep.subr.mxu0 %v405
        %437 = vmatpush1.msra.mxu0 %v404
        %438 = vmatprep.subr.mxu0 %v407
        %439 = vmatpush1.msra.mxu0 %v406
        %440 = vmatprep.subr.mxu0 0.0
        %441 = vmatpush1.msra.mxu0 0.0
        %442 = vmatprep.subr.mxu0 0.0
        %443 = vmatpush1.msra.mxu0 0.0
        %444 = vmatprep.subr.mxu0 0.0
        %445 = vmatpush1.msra.mxu0 0.0
        %446 = vmatprep.subr.mxu0 0.0
        %447 = vmatpush1.msra.mxu0 0.0
        %448 = vmatprep.subr.mxu0 0.0
        %449 = vmatpush1.msra.mxu0 0.0
        %450 = vmatprep.subr.mxu0 0.0
        %451 = vmatpush1.msra.mxu0 0.0
        %452 = vmatprep.subr.mxu0 0.0
        %453 = vmatpush1.msra.mxu0 0.0
        %454 = vmatprep.subr.mxu0 0.0
        %455 = vmatpush1.msra.mxu0 0.0
        %456 = vmatprep.subr.mxu0 0.0
        %457 = vmatpush1.msra.mxu0 0.0
        %458 = vmatprep.subr.mxu0 0.0
        %459 = vmatpush1.msra.mxu0 0.0
        %460 = vmatprep.subr.mxu0 0.0
        %461 = vmatpush1.msra.mxu0 0.0
        %462 = vmatprep.subr.mxu0 0.0
        %463 = vmatpush1.msra.mxu0 0.0
        %464 = vmatprep.subr.mxu0 0.0
        %465 = vmatpush1.msra.mxu0 0.0
        %466 = vmatprep.subr.mxu0 0.0
        %467 = vmatpush1.msra.mxu0 0.0
        %468 = vmatprep.subr.mxu0 0.0
        %469 = vmatpush1.msra.mxu0 0.0
        %470 = vmatprep.subr.mxu0 0.0
        %471 = vmatpush1.msra.mxu0 0.0
        %472 = vmatprep.mubr.f32.mxu0 0.0
        %473 = vmatmul.mubr.f32.gmra.mrb[0].mxu0 %v264
        %v474 = vpop.f32.mrb[0].mxu0
        %v475 = vadd.f32 0.0, %v474
        %v476 = vpop.f32.mrb[0].mxu0
        %v477 = vadd.f32 0.0, %v476
        %478 = vmatprep.mubr.f32.mxu0 0.0
        %479 = vmatmul.mubr.f32.gmra.mrb[0].mxu0 %v265
        %v480 = vpop.f32.mrb[0].mxu0
        %v481 = vadd.f32 0.0, %v480
        %v482 = vpop.f32.mrb[0].mxu0
        %v483 = vadd.f32 0.0, %v482
        %484 = vdwg.mxu0
        %v485 = vxor.u32 %v365, 2147483648
        %v486 = vxor.u32 %v367, 2147483648
        %v487 = vxor.u32 %v371, 2147483648
        %v488 = vxor.u32 %v373, 2147483648
        %v489 = vmul.f32 %v485, 1.442695
        %v490 = vpow.pop %v489
        %v491 = vmul.f32 %v486, 1.442695
        %v492 = vpow.pop %v491
        %v493 = vmul.f32 %v487, 1.442695
        %v494 = vpow.pop %v493
        %v495 = vmul.f32 %v488, 1.442695
        %v496 = vpow.pop %v495
        %v497 = vadd.f32 %v490, 1.0
        %v498 = vadd.f32 %v492, 1.0
        %v499 = vadd.f32 %v494, 1.0
        %v500 = vadd.f32 %v496, 1.0
        %v501 = vrcp.pop %v497
        %v502 = vmul.f32 1.0, %v501
        %v503 = vrcp.pop %v498
        %v504 = vmul.f32 1.0, %v503
        %v505 = vrcp.pop %v499
        %v506 = vmul.f32 1.0, %v505
        %v507 = vrcp.pop %v500
        %v508 = vmul.f32 1.0, %v507
        %v509 = vmul.f32 %v365, %v502
        %v510 = vmul.f32 %v367, %v504
        %v511 = vmul.f32 %v371, %v506
        %v512 = vmul.f32 %v373, %v508
        %v513 = vmul.f32 %v509, %v475
        %v514 = vmul.f32 %v510, %v477
        %v515 = vmul.f32 %v511, %v481
        %v516 = vmul.f32 %v512, %v483
        %v517 = vld [vmem:[#allocation8] sm:$0xff]
        %v518 = vld [vmem:[#allocation8 + $0x8] sm:$0xff]
        %v519 = vld [vmem:[%s231] sm:$0xff]
        %v520 = vld [vmem:[%s231 + $0x8] sm:$0xff]
        %v521 = vld [vmem:[%s231 + $0x10] sm:$0xff]
        %v522 = vld [vmem:[%s231 + $0x18] sm:$0xff]
        %v523 = vld [vmem:[%s231 + $0x20] sm:$0xff]
        %v524 = vld [vmem:[%s231 + $0x28] sm:$0xff]
        %v525 = vld [vmem:[%s231 + $0x30] sm:$0xff]
        %v526 = vld [vmem:[%s231 + $0x38] sm:$0xff]
        %v527 = vld [vmem:[%s231 + $0x40] sm:$0xff]
        %v528 = vld [vmem:[%s231 + $0x48] sm:$0xff]
        %v529 = vld [vmem:[%s231 + $0x50] sm:$0xff]
        %v530 = vld [vmem:[%s231 + $0x58] sm:$0xff]
        %v531 = vld [vmem:[%s231 + $0x60] sm:$0xff]
        %v532 = vld [vmem:[%s231 + $0x68] sm:$0xff]
        %v533 = vld [vmem:[%s231 + $0x70] sm:$0xff]
        %v534 = vld [vmem:[%s231 + $0x78] sm:$0xff]
        %v535 = vld [vmem:[%s231 + $0x80] sm:$0xff]
        %v536 = vld [vmem:[%s231 + $0x88] sm:$0xff]
        %v537 = vld [vmem:[%s231 + $0x90] sm:$0xff]
        %v538 = vld [vmem:[%s231 + $0x98] sm:$0xff]
        %v539 = vld [vmem:[%s231 + $0xa0] sm:$0xff]
        %v540 = vld [vmem:[%s231 + $0xa8] sm:$0xff]
        %v541 = vld [vmem:[%s231 + $0xb0] sm:$0xff]
        %v542 = vld [vmem:[%s231 + $0xb8] sm:$0xff]
        %v543 = vld [vmem:[%s231 + $0xc0] sm:$0xff]
        %v544 = vld [vmem:[%s231 + $0xc8] sm:$0xff]
        %v545 = vld [vmem:[%s231 + $0xd0] sm:$0xff]
        %v546 = vld [vmem:[%s231 + $0xd8] sm:$0xff]
        %v547 = vld [vmem:[%s231 + $0xe0] sm:$0xff]
        %v548 = vld [vmem:[%s231 + $0xe8] sm:$0xff]
        %v549 = vld [vmem:[%s231 + $0xf0] sm:$0xff]
        %v550 = vld [vmem:[%s231 + $0xf8] sm:$0xff]
        %551 = vmatprep.subr.mxu0 0.0
        %552 = vmatpush1.msra.mxu0 %v519
        %553 = vmatprep.subr.mxu0 0.0
        %554 = vmatpush1.msra.mxu0 %v520
        %555 = vmatprep.subr.mxu0 0.0
        %556 = vmatpush1.msra.mxu0 %v521
        %557 = vmatprep.subr.mxu0 0.0
        %558 = vmatpush1.msra.mxu0 %v522
        %559 = vmatprep.subr.mxu0 0.0
        %560 = vmatpush1.msra.mxu0 %v523
        %561 = vmatprep.subr.mxu0 0.0
        %562 = vmatpush1.msra.mxu0 %v524
        %563 = vmatprep.subr.mxu0 0.0
        %564 = vmatpush1.msra.mxu0 %v525
        %565 = vmatprep.subr.mxu0 0.0
        %566 = vmatpush1.msra.mxu0 %v526
        %567 = vmatprep.subr.mxu0 0.0
        %568 = vmatpush1.msra.mxu0 %v527
        %569 = vmatprep.subr.mxu0 0.0
        %570 = vmatpush1.msra.mxu0 %v528
        %571 = vmatprep.subr.mxu0 0.0
        %572 = vmatpush1.msra.mxu0 %v529
        %573 = vmatprep.subr.mxu0 0.0
        %574 = vmatpush1.msra.mxu0 %v530
        %575 = vmatprep.subr.mxu0 0.0
        %576 = vmatpush1.msra.mxu0 %v531
        %577 = vmatprep.subr.mxu0 0.0
        %578 = vmatpush1.msra.mxu0 %v532
        %579 = vmatprep.subr.mxu0 0.0
        %580 = vmatpush1.msra.mxu0 %v533
        %581 = vmatprep.subr.mxu0 0.0
        %582 = vmatpush1.msra.mxu0 %v534
        %583 = vmatprep.subr.mxu0 0.0
        %584 = vmatpush1.msra.mxu0 %v535
        %585 = vmatprep.subr.mxu0 0.0
        %586 = vmatpush1.msra.mxu0 %v536
        %587 = vmatprep.subr.mxu0 0.0
        %588 = vmatpush1.msra.mxu0 %v537
        %589 = vmatprep.subr.mxu0 0.0
        %590 = vmatpush1.msra.mxu0 %v538
        %591 = vmatprep.subr.mxu0 0.0
        %592 = vmatpush1.msra.mxu0 %v539
        %593 = vmatprep.subr.mxu0 0.0
        %594 = vmatpush1.msra.mxu0 %v540
        %595 = vmatprep.subr.mxu0 0.0
        %596 = vmatpush1.msra.mxu0 %v541
        %597 = vmatprep.subr.mxu0 0.0
        %598 = vmatpush1.msra.mxu0 %v542
        %599 = vmatprep.subr.mxu0 0.0
        %600 = vmatpush1.msra.mxu0 %v543
        %601 = vmatprep.subr.mxu0 0.0
        %602 = vmatpush1.msra.mxu0 %v544
        %603 = vmatprep.subr.mxu0 0.0
        %604 = vmatpush1.msra.mxu0 %v545
        %605 = vmatprep.subr.mxu0 0.0
        %606 = vmatpush1.msra.mxu0 %v546
        %607 = vmatprep.subr.mxu0 0.0
        %608 = vmatpush1.msra.mxu0 %v547
        %609 = vmatprep.subr.mxu0 0.0
        %610 = vmatpush1.msra.mxu0 %v548
        %611 = vmatprep.subr.mxu0 0.0
        %612 = vmatpush1.msra.mxu0 %v549
        %613 = vmatprep.subr.mxu0 0.0
        %614 = vmatpush1.msra.mxu0 %v550
        %615 = vmatprep.mubr.f32.mxu0 %v514
        %616 = vmatmul.mubr.f32.gmra.mrb[0].mxu0 %v513
        %v617 = vpop.f32.mrb[0].mxu0
        %v618 = vadd.f32 0.0, %v617
        %v619 = vpop.f32.mrb[0].mxu0
        %620 = vmatprep.mubr.f32.mxu0 %v516
        %621 = vmatmul.mubr.f32.gmra.mrb[0].mxu0 %v515
        %v622 = vpop.f32.mrb[0].mxu0
        %v623 = vadd.f32 0.0, %v622
        %v624 = vpop.f32.mrb[0].mxu0
        %625 = vdwg.mxu0
        %v626 = vadd.f32 %v517, %v618
        %v627 = vadd.f32 %v518, %v623
        %628 = vst [vmem:[#allocation8] sm:$0xff] %v626
        %629 = vst [vmem:[#allocation8 + $0x8] sm:$0xff] %v627
        // Predicated region
        $region49: #{tpu_custom_call.1} parent=31 // pred_check
          %p630 = pneg %p127
        $region50: #{tpu_custom_call.1} parent=31 // pred_check_branch
          %632 = sbr.rel (%p630) target = $region52
        $region51: #{tpu_custom_call.1} parent=31 // pred_region
          %s633 = smul.u32 2, %s23
          %s635 = ssub.s32 256, 256
          %636 = vsyncadd [#allocation4], %s635
          %s637 = smul.addr %s633, 128
          %s638 = scalar_lea.hbm %s3, %s637
          %s639 = sshll.u32 [#allocation8], 4
          %s640 = int_to_ptr.vmem [resolvable:$true] %s639
          %645 = dma.vmem_to_hbm [thread:$0]  %s640, 256, %s638, [#allocation4], 128, 128, 8
        $region52: #{tpu_custom_call.1} parent=31 // pred_fallthru
          _
        // Predicated region
        $region53: #{tpu_custom_call.1} parent=31 // pred_check
          %p646 = pneg %p127
        $region54: #{tpu_custom_call.1} parent=31 // pred_check_branch
          %648 = sbr.rel (%p646) target = $region56
        $region55: #{tpu_custom_call.1} parent=31 // pred_region
          %649 = dma.done [#allocation4], 256
        $region56: #{tpu_custom_call.1} parent=31 // pred_fallthru
          _
      $region32: #{tpu_custom_call.1} parent=5 // pred_fallthru
        _
      %p650 = scmp.le.s32.totalorder 2, %s14
      // Predicated region
      $region57: #{tpu_custom_call.1} parent=5 // pred_check
        %p651 = pneg %p650
      $region58: #{tpu_custom_call.1} parent=5 // pred_check_branch
        %653 = sbr.rel (%p651) target = $region60
      $region59: #{tpu_custom_call.1} parent=5 // pred_region
        %s654 = ssub.s32 %s14, 2
      $region60: #{tpu_custom_call.1} parent=5 // pred_fallthru
        _
    $region6: #{tpu_custom_call.1} parent=1 // loop_footer
      %s18 = sadd.s32 1, %s14
    $region7: #{tpu_custom_call.1} parent=1 // loop_footer_branch
      %13 = sbr.rel target = $region3
    $region8: #{tpu_custom_call.1} parent=1 // loop_exit
      _
    %655 = vsyncpa [#allocation3], 1
    %s656 = scalar_lea.sflag [#allocation3], 1
    %657 = vsyncpa %s656, 1
    %658 = vsyncpa [#allocation6], 1
    %s659 = scalar_lea.sflag [#allocation6], 1
    %660 = vsyncpa %s659, 1
    %661 = vsyncpa [#allocation4], 1
    %s662 = scalar_lea.sflag [#allocation4], 1
    %663 = vsyncpa %s662, 1

</llo_original>
